<compile_context>
chip_gen: v7x
topology: tpu7x:2x2x1
jax: 0.10.0
libtpu: 0.0.40
codegen_flags: <defaults>
</compile_context>

<pallas_src>
import functools

import jax
import jax.numpy as jnp
from jax.experimental import pallas as pl
from jax.experimental.pallas import tpu as pltpu


def _round_up(x, m):
    return (x + m - 1) // m * m


# ---------------------------------------------------------------------------
# Pass 1: GIN aggregation + MLP + LeakyReLU  (pre-BatchNorm activations).
# ---------------------------------------------------------------------------
def _gin_mlp_kernel(adj_ref, x_ref, w1_ref, b1_ref, w2_ref, b2_ref,
                    w3_ref, b3_ref, h_ref, *, neg_slope):
    # First Linear reassociated through the sum aggregation (mathematically identical).
    # x and W1 are tiny and resident; recomputing xw per tile costs < 4/TM of the main
    # matmul's FLOPs and keeps all module compute inside the kernel.
    xw = jnp.dot(x_ref[...], w1_ref[...], preferred_element_type=jnp.float32)       # [N_pad, H1]

    # Aggregation for this row tile: adjacency streamed from HBM in bf16 (half the
    # bytes); math in f32 for exactness (HBM-bound, not MXU-bound).
    adj = adj_ref[...].astype(jnp.float32)                                           # [TM, N_pad]
    h = jnp.dot(adj, xw, preferred_element_type=jnp.float32) + b1_ref[...]           # [TM, H1]
    h = jax.nn.sigmoid(h)

    h = jax.nn.sigmoid(
        jnp.dot(h, w2_ref[...], preferred_element_type=jnp.float32) + b2_ref[...])   # [TM, H2]
    h = jnp.dot(h, w3_ref[...], preferred_element_type=jnp.float32) + b3_ref[...]    # [TM, F_pad]

    # LeakyReLU(negative_slope=0.01)
    h_ref[...] = jnp.where(h >= 0, h, neg_slope * h)


# ---------------------------------------------------------------------------
# Pass 2: BatchNorm1d normalization with (pre-reduced) batch statistics.
# ---------------------------------------------------------------------------
def _batchnorm_kernel(h_ref, mean_ref, var_ref, gamma_ref, beta_ref, out_ref, *, bn_eps):
    inv_std = jax.lax.rsqrt(var_ref[...] + bn_eps)
    out_ref[...] = ((h_ref[...] - mean_ref[...]) * inv_std * gamma_ref[...]
                    + beta_ref[...]).astype(out_ref.dtype)


# ---------------------------------------------------------------------------
# Wrapper
# ---------------------------------------------------------------------------
def coll_conv(x, edge_index, params, *, eps=0.0, bn_eps=1e-5, neg_slope=0.01,
              block_rows=512):
    """x: [N, F_in] float32, edge_index: [2, E] int32. Returns ([N, F_out], edge_index)."""
    n, f_in = x.shape
    h1 = params["w1"].shape[1]
    h2 = params["w2"].shape[1]
    f_out = params["w3"].shape[1]
    f_pad = _round_up(f_out, 128)                      # lane-dense output width

    # Row tile: multiple of 8 sublanes, capped by the (padded) node count.
    # block_rows=512 keeps the double-buffered bf16 adjacency stream <= ~16-24 MiB
    # even at large N (fits v7x's 64 MiB / v5e's scoped VMEM); v6e could go larger.
    tm = min(_round_up(block_rows, 8), _round_up(n, 8))
    n_pad = _round_up(n, tm)
    num_tiles = n_pad // tm

    # ---- wrapper glue: dense GIN operator  A_hat = A + (1+eps) I  in bf16 ----
    # A[i, j] = #edges j->i, so sum-aggregation == A @ x; the (1+eps) self term is
    # folded into the diagonal. Small-integer multiplicities are exact in bf16.
    src, dst = edge_index[0], edge_index[1]
    diag = jnp.arange(n_pad)
    adj = (jnp.zeros((n_pad, n_pad), jnp.float32)
           .at[dst, src].add(1.0)
           .at[diag, diag].add(1.0 + eps)
           .astype(jnp.bfloat16))

    x_pad = jnp.pad(x.astype(jnp.float32), ((0, n_pad - n), (0, 0)))

    # Zero-pad the output-facing parameters to the lane-dense width.
    w3p = jnp.pad(params["w3"], ((0, 0), (0, f_pad - f_out)))
    b3p = jnp.pad(params["b3"], ((0, 0), (0, f_pad - f_out)))
    gammap = jnp.pad(params["gamma"], ((0, 0), (0, f_pad - f_out)))
    betap = jnp.pad(params["beta"], ((0, 0), (0, f_pad - f_out)))

    const = lambda shape: pl.BlockSpec(shape, lambda i: (0, 0))     # resident across tiles
    row_tile = lambda shape: pl.BlockSpec(shape, lambda i: (i, 0))  # streamed per tile

    compiler_params = pltpu.CompilerParams(
        dimension_semantics=("parallel",),      # 2 TCs on v7x; harmless on v5e/v6e
        vmem_limit_bytes=64 * 1024 * 1024,
    )

    # ---- Pass 1: GIN + MLP + LeakyReLU (pre-BN), row-tiled ----
    flops1 = (2 * n_pad * n_pad * h1                       # aggregation matmul
              + 2 * n_pad * f_in * h1 * num_tiles          # per-tile x@W1 recompute
              + 2 * n_pad * (h1 * h2 + h2 * f_pad))        # rest of the MLP
    bytes1 = (n_pad * n_pad * 2                            # bf16 adjacency stream
              + n_pad * f_in * 4 + n_pad * f_pad * 4)
    h_pre = pl.pallas_call(
        functools.partial(_gin_mlp_kernel, neg_slope=neg_slope),
        out_shape=jax.ShapeDtypeStruct((n_pad, f_pad), jnp.float32),
        grid=(num_tiles,),
        in_specs=[
            row_tile((tm, n_pad)),               # adjacency: the only big streamed array
            const((n_pad, f_in)),                # x, resident
            const((f_in, h1)), const((1, h1)),   # W1, b1
            const((h1, h2)), const((1, h2)),     # W2, b2
            const((h2, f_pad)), const((1, f_pad)),  # W3, b3 (lane-padded)
        ],
        out_specs=row_tile((tm, f_pad)),
        compiler_params=compiler_params,
        cost_estimate=pl.CostEstimate(flops=flops1,
                                      transcendentals=n_pad * (h1 + h2),
                                      bytes_accessed=bytes1),
    )(adj, x_pad, params["w1"], params["b1"], params["w2"], params["b2"], w3p, b3p)

    # ---- Batch statistics over the REAL nodes only (tiny XLA epilogue) ----
    h_valid = h_pre[:n]
    mean = jnp.mean(h_valid, axis=0, keepdims=True)
    var = jnp.mean(jnp.square(h_valid - mean), axis=0, keepdims=True)  # biased (BN training mode)

    # ---- Pass 2: apply BatchNorm per row tile (lane-dense) ----
    out_pad = pl.pallas_call(
        functools.partial(_batchnorm_kernel, bn_eps=bn_eps),
        out_shape=jax.ShapeDtypeStruct((n_pad, f_pad), jnp.float32),
        grid=(num_tiles,),
        in_specs=[
            row_tile((tm, f_pad)),
            const((1, f_pad)), const((1, f_pad)),
            const((1, f_pad)), const((1, f_pad)),
        ],
        out_specs=row_tile((tm, f_pad)),
        compiler_params=compiler_params,
        cost_estimate=pl.CostEstimate(flops=4 * n_pad * f_pad,
                                      transcendentals=0,
                                      bytes_accessed=2 * n_pad * f_pad * 4),
    )(h_pre, mean, var, gammap, betap)

    return out_pad[:n, :f_out], edge_index


# ---------------------------------------------------------------------------
# Parameters + pure-JAX reference (for correctness check)
# ---------------------------------------------------------------------------
def init_params(key, f_in, hidden_dims, f_out):
    h1, h2 = hidden_dims
    k1, k2, k3 = jax.random.split(key, 3)

    def lin(k, fan_in, fan_out):
        bound = 1.0 / jnp.sqrt(fan_in)
        kw, kb = jax.random.split(k)
        w = jax.random.uniform(kw, (fan_in, fan_out), jnp.float32, -bound, bound)
        b = jax.random.uniform(kb, (1, fan_out), jnp.float32, -bound, bound)
        return w, b

    w1, b1 = lin(k1, f_in, h1)
    w2, b2 = lin(k2, h1, h2)
    w3, b3 = lin(k3, h2, f_out)
    return dict(w1=w1, b1=b1, w2=w2, b2=b2, w3=w3, b3=b3,
                gamma=jnp.ones((1, f_out), jnp.float32),
                beta=jnp.zeros((1, f_out), jnp.float32))


def _reference(x, edge_index, params, *, eps=0.0, bn_eps=1e-5, neg_slope=0.01):
    n = x.shape[0]
    src, dst = edge_index[0], edge_index[1]
    adj = jnp.zeros((n, n), jnp.float32).at[dst, src].add(1.0)
    hp = jax.lax.Precision.HIGHEST
    h = (1.0 + eps) * x + jnp.dot(adj, x, precision=hp)
    h = jax.nn.sigmoid(jnp.dot(h, params["w1"], precision=hp) + params["b1"])
    h = jax.nn.sigmoid(jnp.dot(h, params["w2"], precision=hp) + params["b2"])
    h = jnp.dot(h, params["w3"], precision=hp) + params["b3"]
    h = jnp.where(h >= 0, h, neg_slope * h)
    mean = jnp.mean(h, axis=0, keepdims=True)
    var = jnp.mean(jnp.square(h - mean), axis=0, keepdims=True)
    return (h - mean) * jax.lax.rsqrt(var + bn_eps) * params["gamma"] + params["beta"]


if __name__ == "__main__":
    N, F_IN, F_OUT = 16, 4, 8
    HIDDEN = (32, 64)
    E = 32

    key = jax.random.PRNGKey(0)
    kx, ke, kp = jax.random.split(key, 3)

    x = jax.random.normal(kx, (N, F_IN), jnp.float32)
    edge_index = jax.random.randint(ke, (2, E), 0, N, jnp.int32)
    params = init_params(kp, F_IN, HIDDEN, F_OUT)

    out, ei = coll_conv(x, edge_index, params)
    jax.block_until_ready(out)

    assert out.shape == (N, F_OUT)
    assert bool(jnp.all(jnp.isfinite(out)))
    ref = _reference(x, edge_index, params)
    assert bool(jnp.allclose(out, ref, atol=1e-2, rtol=1e-2)), \
        float(jnp.max(jnp.abs(out - ref)))
    print("KERNEL_OK")
</pallas_src>

<mosaic_0001>
module attributes {stable_mosaic.version = 11 : i64} {
  func.func @_gin_mlp_kernel(%arg0: i32, %arg1: memref<16x16xbf16, #tpu.memory_space<vmem>>, %arg2: memref<16x4xf32, #tpu.memory_space<vmem>>, %arg3: memref<4x32xf32, #tpu.memory_space<vmem>>, %arg4: memref<1x32xf32, #tpu.memory_space<vmem>>, %arg5: memref<32x64xf32, #tpu.memory_space<vmem>>, %arg6: memref<1x64xf32, #tpu.memory_space<vmem>>, %arg7: memref<64x128xf32, #tpu.memory_space<vmem>>, %arg8: memref<1x128xf32, #tpu.memory_space<vmem>>, %arg9: memref<16x128xf32, #tpu.memory_space<vmem>>) attributes {dimension_semantics = [#tpu.dimension_semantics<parallel>], iteration_bounds = array<i64: 1>, scalar_prefetch = 0 : i64, scratch_operands = 0 : i64, tpu.core_type = #tpu.core_type<tc>, window_params = [{transform_indices = @transform_0, window_bounds = array<i64: 16, 16>}, {pipeline_mode = #tpu.pipeline_mode<synchronous>, transform_indices = @transform_1, window_bounds = array<i64: 16, 4>}, {pipeline_mode = #tpu.pipeline_mode<synchronous>, transform_indices = @transform_2, window_bounds = array<i64: 4, 32>}, {pipeline_mode = #tpu.pipeline_mode<synchronous>, transform_indices = @transform_3, window_bounds = array<i64: 1, 32>}, {pipeline_mode = #tpu.pipeline_mode<synchronous>, transform_indices = @transform_4, window_bounds = array<i64: 32, 64>}, {pipeline_mode = #tpu.pipeline_mode<synchronous>, transform_indices = @transform_5, window_bounds = array<i64: 1, 64>}, {pipeline_mode = #tpu.pipeline_mode<synchronous>, transform_indices = @transform_6, window_bounds = array<i64: 64, 128>}, {pipeline_mode = #tpu.pipeline_mode<synchronous>, transform_indices = @transform_7, window_bounds = array<i64: 1, 128>}, {transform_indices = @transform_8, window_bounds = array<i64: 16, 128>}]} {
    %c0 = arith.constant 0 : index
    %c0_0 = arith.constant 0 : index
    %0 = vector.load %arg2[%c0, %c0_0] : memref<16x4xf32, #tpu.memory_space<vmem>>, vector<16x4xf32>
    %c0_1 = arith.constant 0 : index
    %c0_2 = arith.constant 0 : index
    %1 = vector.load %arg3[%c0_1, %c0_2] : memref<4x32xf32, #tpu.memory_space<vmem>>, vector<4x32xf32>
    %cst = arith.constant dense<0.000000e+00> : vector<16x32xf32>
    %2 = tpu.matmul %0, %1, %cst {dimension_numbers = #tpu.dot_dimension_numbers<[1], [0], [0], [1], [0, 0, 1, 1], [], []>} : vector<16x4xf32>, vector<4x32xf32>, vector<16x32xf32> -> vector<16x32xf32>
    %c0_3 = arith.constant 0 : index
    %c0_4 = arith.constant 0 : index
    %3 = vector.load %arg1[%c0_3, %c0_4] : memref<16x16xbf16, #tpu.memory_space<vmem>>, vector<16x16xbf16>
    %4 = arith.extf %3 : vector<16x16xbf16> to vector<16x16xf32>
    %cst_5 = arith.constant dense<0.000000e+00> : vector<16x32xf32>
    %5 = tpu.matmul %4, %2, %cst_5 {dimension_numbers = #tpu.dot_dimension_numbers<[1], [0], [0], [1], [0, 0, 1, 1], [], []>} : vector<16x16xf32>, vector<16x32xf32>, vector<16x32xf32> -> vector<16x32xf32>
    %c0_6 = arith.constant 0 : index
    %c0_7 = arith.constant 0 : index
    %6 = vector.load %arg4[%c0_6, %c0_7] : memref<1x32xf32, #tpu.memory_space<vmem>>, vector<1x32xf32>
    %7 = vector.broadcast %6 : vector<1x32xf32> to vector<16x32xf32>
    %8 = arith.addf %5, %7 : vector<16x32xf32>
    %9 = arith.negf %8 : vector<16x32xf32>
    %10 = math.exp %9 : vector<16x32xf32>
    %cst_8 = arith.constant 1.000000e+00 : f32
    %11 = vector.broadcast %cst_8 : f32 to vector<16x32xf32>
    %12 = arith.addf %11, %10 : vector<16x32xf32>
    %13 = arith.divf %11, %12 : vector<16x32xf32>
    %c0_9 = arith.constant 0 : index
    %c0_10 = arith.constant 0 : index
    %14 = vector.load %arg5[%c0_9, %c0_10] : memref<32x64xf32, #tpu.memory_space<vmem>>, vector<32x64xf32>
    %cst_11 = arith.constant dense<0.000000e+00> : vector<16x64xf32>
    %15 = tpu.matmul %13, %14, %cst_11 {dimension_numbers = #tpu.dot_dimension_numbers<[1], [0], [0], [1], [0, 0, 1, 1], [], []>} : vector<16x32xf32>, vector<32x64xf32>, vector<16x64xf32> -> vector<16x64xf32>
    %c0_12 = arith.constant 0 : index
    %c0_13 = arith.constant 0 : index
    %16 = vector.load %arg6[%c0_12, %c0_13] : memref<1x64xf32, #tpu.memory_space<vmem>>, vector<1x64xf32>
    %17 = vector.broadcast %16 : vector<1x64xf32> to vector<16x64xf32>
    %18 = arith.addf %15, %17 : vector<16x64xf32>
    %19 = arith.negf %18 : vector<16x64xf32>
    %20 = math.exp %19 : vector<16x64xf32>
    %cst_14 = arith.constant 1.000000e+00 : f32
    %21 = vector.broadcast %cst_14 : f32 to vector<16x64xf32>
    %22 = arith.addf %21, %20 : vector<16x64xf32>
    %23 = arith.divf %21, %22 : vector<16x64xf32>
    %c0_15 = arith.constant 0 : index
    %c0_16 = arith.constant 0 : index
    %24 = vector.load %arg7[%c0_15, %c0_16] : memref<64x128xf32, #tpu.memory_space<vmem>>, vector<64x128xf32>
    %cst_17 = arith.constant dense<0.000000e+00> : vector<16x128xf32>
    %25 = tpu.matmul %23, %24, %cst_17 {dimension_numbers = #tpu.dot_dimension_numbers<[1], [0], [0], [1], [0, 0, 1, 1], [], []>} : vector<16x64xf32>, vector<64x128xf32>, vector<16x128xf32> -> vector<16x128xf32>
    %c0_18 = arith.constant 0 : index
    %c0_19 = arith.constant 0 : index
    %26 = vector.load %arg8[%c0_18, %c0_19] : memref<1x128xf32, #tpu.memory_space<vmem>>, vector<1x128xf32>
    %27 = vector.broadcast %26 : vector<1x128xf32> to vector<16x128xf32>
    %28 = arith.addf %25, %27 : vector<16x128xf32>
    %cst_20 = arith.constant 0.000000e+00 : f32
    %29 = vector.broadcast %cst_20 : f32 to vector<16x128xf32>
    %30 = arith.cmpf oge, %28, %29 : vector<16x128xf32>
    %cst_21 = arith.constant 0.00999999977 : f32
    %31 = vector.broadcast %cst_21 : f32 to vector<16x128xf32>
    %32 = arith.mulf %31, %28 : vector<16x128xf32>
    %33 = arith.select %30, %28, %32 : vector<16x128xi1>, vector<16x128xf32>
    %c0_22 = arith.constant 0 : index
    %c0_23 = arith.constant 0 : index
    %34 = vector.load %arg9[%c0_22, %c0_23] : memref<16x128xf32, #tpu.memory_space<vmem>>, vector<16x128xf32>
    tpu.vector_store %arg9[%c0_22, %c0_23], %33 {strides = array<i32>} : memref<16x128xf32, #tpu.memory_space<vmem>>, vector<16x128xf32>,
    return
  }
  func.func @transform_0(%arg0: i32) -> (i32, i32) {
    %c0_i32 = arith.constant 0 : i32
    %c0_i32_0 = arith.constant 0 : i32
    return %arg0, %c0_i32 : i32, i32
  }
  func.func @transform_1(%arg0: i32) -> (i32, i32) {
    %c0_i32 = arith.constant 0 : i32
    %c0_i32_0 = arith.constant 0 : i32
    %c0_i32_1 = arith.constant 0 : i32
    return %c0_i32, %c0_i32_0 : i32, i32
  }
  func.func @transform_2(%arg0: i32) -> (i32, i32) {
    %c0_i32 = arith.constant 0 : i32
    %c0_i32_0 = arith.constant 0 : i32
    %c0_i32_1 = arith.constant 0 : i32
    return %c0_i32, %c0_i32_0 : i32, i32
  }
  func.func @transform_3(%arg0: i32) -> (i32, i32) {
    %c0_i32 = arith.constant 0 : i32
    %c0_i32_0 = arith.constant 0 : i32
    %c0_i32_1 = arith.constant 0 : i32
    return %c0_i32, %c0_i32_0 : i32, i32
  }
  func.func @transform_4(%arg0: i32) -> (i32, i32) {
    %c0_i32 = arith.constant 0 : i32
    %c0_i32_0 = arith.constant 0 : i32
    %c0_i32_1 = arith.constant 0 : i32
    return %c0_i32, %c0_i32_0 : i32, i32
  }
  func.func @transform_5(%arg0: i32) -> (i32, i32) {
    %c0_i32 = arith.constant 0 : i32
    %c0_i32_0 = arith.constant 0 : i32
    %c0_i32_1 = arith.constant 0 : i32
    return %c0_i32, %c0_i32_0 : i32, i32
  }
  func.func @transform_6(%arg0: i32) -> (i32, i32) {
    %c0_i32 = arith.constant 0 : i32
    %c0_i32_0 = arith.constant 0 : i32
    %c0_i32_1 = arith.constant 0 : i32
    return %c0_i32, %c0_i32_0 : i32, i32
  }
  func.func @transform_7(%arg0: i32) -> (i32, i32) {
    %c0_i32 = arith.constant 0 : i32
    %c0_i32_0 = arith.constant 0 : i32
    %c0_i32_1 = arith.constant 0 : i32
    return %c0_i32, %c0_i32_0 : i32, i32
  }
  func.func @transform_8(%arg0: i32) -> (i32, i32) {
    %c0_i32 = arith.constant 0 : i32
    %c0_i32_0 = arith.constant 0 : i32
    return %arg0, %c0_i32 : i32, i32
  }
}

</mosaic_0001>

<llo_original>
// kernel: tpu_custom_call.1
$region0: #{tpu_custom_call.1}
  #allocation0 [shape = 'u32[]', space=smem, size = 0x4, offset = 0x4, fixed_abs, tag = 'smem constant byte address 0x4 - core index']
  #allocation1 [shape = 'u32[144,128]{1,0:T(1,128)}', space=vmem, size = 0x12000, scoped, tag = 'internal scratch']
  %s0 = inlined_call_operand.hbm [shape: bf16[16,16], index: 0, kind: input, shape index: {}]
  %s1 = inlined_call_operand.hbm [shape: f32[16,4], index: 1, kind: input, shape index: {}]
  %s2 = inlined_call_operand.hbm [shape: f32[4,32], index: 2, kind: input, shape index: {}]
  %s3 = inlined_call_operand.hbm [shape: f32[1,32], index: 3, kind: input, shape index: {}]
  %s4 = inlined_call_operand.hbm [shape: f32[32,64], index: 4, kind: input, shape index: {}]
  %s5 = inlined_call_operand.hbm [shape: f32[1,64], index: 5, kind: input, shape index: {}]
  %s6 = inlined_call_operand.hbm [shape: f32[64,128], index: 6, kind: input, shape index: {}]
  %s7 = inlined_call_operand.hbm [shape: f32[1,128], index: 7, kind: input, shape index: {}]
  %s8 = inlined_call_operand.hbm [shape: f32[16,128], index: 8, kind: output, shape index: {}]
  %s9 = sld [smem:[#allocation0]]
  $region74: #{tpu_custom_call.1} parent=0
    _
  %s11 = ssub.s32 1, %s9
  %s12 = scalar_select 0, %s11, %s9
  $region1: #{tpu_custom_call.1} parent=0
    #allocation2 [shape = 'u8[4096]{0}', space=vmem, size = 0x1000, scoped, tag = 'input window, operand 0, single buffered']
    #allocation3 [shape = 's32[1]{0}', space=sflag, size = 0x4, scoped, tag = 'scoped memory for tpu_custom_call.1']
    #allocation4 [shape = 's32[1]{0}', space=sflag, size = 0x4, scoped, tag = 'scoped memory for tpu_custom_call.1']
    #allocation5 [shape = 'u8[8192]{0}', space=vmem, size = 0x2000, scoped, tag = 'input window, operand 1, single buffered']
    #allocation6 [shape = 's32[1]{0}', space=sflag, size = 0x4, scoped, tag = 'scoped memory for tpu_custom_call.1']
    #allocation7 [shape = 'u8[2048]{0}', space=vmem, size = 0x800, scoped, tag = 'input window, operand 2, single buffered']
    #allocation8 [shape = 'u8[512]{0}', space=vmem, size = 0x400, scoped, tag = 'input window, operand 3, single buffered']
    #allocation9 [shape = 's32[1]{0}', space=sflag, size = 0x4, scoped, tag = 'scoped memory for tpu_custom_call.1']
    #allocation10 [shape = 'u8[16384]{0}', space=vmem, size = 0x4000, scoped, tag = 'input window, operand 4, single buffered']
    #allocation11 [shape = 'u8[512]{0}', space=vmem, size = 0x400, scoped, tag = 'input window, operand 5, single buffered']
    #allocation12 [shape = 's32[1]{0}', space=sflag, size = 0x4, scoped, tag = 'scoped memory for tpu_custom_call.1']
    #allocation13 [shape = 'u8[32768]{0}', space=vmem, size = 0x8000, scoped, tag = 'input window, operand 6, single buffered']
    #allocation14 [shape = 'u8[512]{0}', space=vmem, size = 0x400, scoped, tag = 'input window, operand 7, single buffered']
    #allocation15 [shape = 's32[1]{0}', space=sflag, size = 0x4, scoped, tag = 'scoped memory for tpu_custom_call.1']
    #allocation16 [shape = 'u8[8192]{0}', space=vmem, size = 0x2000, scoped, tag = 'output window, operand 0, single buffered']
    %13 = vsyncpa [#allocation3], 0
    %14 = vsyncpa [#allocation6], 0
    %15 = vsyncpa [#allocation9], 0
    %16 = vsyncpa [#allocation12], 0
    %17 = vsyncpa [#allocation15], 0
    %18 = vsyncpa [#allocation4], 0
    // Predicated region
    $region2: #{tpu_custom_call.1} parent=1 // pred_check
      _
    $region3: #{tpu_custom_call.1} parent=1 // pred_check_branch
      %20 = sbr.rel (0) target = $region5
    $region4: #{tpu_custom_call.1} parent=1 // pred_region
      %s22 = ssub.s32 128, 128
      %23 = vsyncadd [#allocation3], %s22
      %s24 = sshll.u32 [#allocation2], 4
      %s25 = int_to_ptr.vmem [resolvable:$true] %s24
      %30 = dma.hbm_to_vmem [thread:$0]  %s0, 128, %s25, [#allocation3], 64, 64, 4
    $region5: #{tpu_custom_call.1} parent=1 // pred_fallthru
      _
    // Predicated region
    $region6: #{tpu_custom_call.1} parent=1 // pred_check
      _
    $region7: #{tpu_custom_call.1} parent=1 // pred_check_branch
      %32 = sbr.rel (0) target = $region9
    $region8: #{tpu_custom_call.1} parent=1 // pred_region
      %s34 = ssub.s32 256, 256
      %35 = vsyncadd [#allocation6], %s34
      %s36 = sshll.u32 [#allocation5], 4
      %s37 = int_to_ptr.vmem [resolvable:$true] %s36
      %42 = dma.hbm_to_vmem [thread:$0]  %s1, 256, %s37, [#allocation6], 128, 128, 8
    $region9: #{tpu_custom_call.1} parent=1 // pred_fallthru
      _
    // Predicated region
    $region10: #{tpu_custom_call.1} parent=1 // pred_check
      _
    $region11: #{tpu_custom_call.1} parent=1 // pred_check_branch
      %44 = sbr.rel (0) target = $region13
    $region12: #{tpu_custom_call.1} parent=1 // pred_region
      %s46 = ssub.s32 64, 64
      %47 = vsyncadd [#allocation6], %s46
      %s49 = sshll.u32 [#allocation7], 4
      %s50 = int_to_ptr.vmem [resolvable:$true] %s49
      %52 = dma.hbm_to_vmem [thread:$0]  %s2, 64, %s50, [#allocation6]
    $region13: #{tpu_custom_call.1} parent=1 // pred_fallthru
      _
    // Predicated region
    $region14: #{tpu_custom_call.1} parent=1 // pred_check
      _
    $region15: #{tpu_custom_call.1} parent=1 // pred_check_branch
      %54 = sbr.rel (0) target = $region17
    $region16: #{tpu_custom_call.1} parent=1 // pred_region
      %s56 = ssub.s32 16, 16
      %57 = vsyncadd [#allocation9], %s56
      %s59 = sshll.u32 [#allocation8], 4
      %s60 = int_to_ptr.vmem [resolvable:$true] %s59
      %62 = dma.hbm_to_vmem [thread:$0]  %s3, 16, %s60, [#allocation9]
    $region17: #{tpu_custom_call.1} parent=1 // pred_fallthru
      _
    // Predicated region
    $region18: #{tpu_custom_call.1} parent=1 // pred_check
      _
    $region19: #{tpu_custom_call.1} parent=1 // pred_check_branch
      %64 = sbr.rel (0) target = $region21
    $region20: #{tpu_custom_call.1} parent=1 // pred_region
      %s66 = ssub.s32 512, 512
      %67 = vsyncadd [#allocation9], %s66
      %s68 = sshll.u32 [#allocation10], 4
      %s69 = int_to_ptr.vmem [resolvable:$true] %s68
      %74 = dma.hbm_to_vmem [thread:$0]  %s4, 512, %s69, [#allocation9], 128, 128, 8
    $region21: #{tpu_custom_call.1} parent=1 // pred_fallthru
      _
    // Predicated region
    $region22: #{tpu_custom_call.1} parent=1 // pred_check
      _
    $region23: #{tpu_custom_call.1} parent=1 // pred_check_branch
      %76 = sbr.rel (0) target = $region25
    $region24: #{tpu_custom_call.1} parent=1 // pred_region
      %s78 = ssub.s32 16, 16
      %79 = vsyncadd [#allocation12], %s78
      %s81 = sshll.u32 [#allocation11], 4
      %s82 = int_to_ptr.vmem [resolvable:$true] %s81
      %84 = dma.hbm_to_vmem [thread:$0]  %s5, 16, %s82, [#allocation12]
    $region25: #{tpu_custom_call.1} parent=1 // pred_fallthru
      _
    // Predicated region
    $region26: #{tpu_custom_call.1} parent=1 // pred_check
      _
    $region27: #{tpu_custom_call.1} parent=1 // pred_check_branch
      %86 = sbr.rel (0) target = $region29
    $region28: #{tpu_custom_call.1} parent=1 // pred_region
      %s88 = ssub.s32 1024, 1024
      %89 = vsyncadd [#allocation12], %s88
      %s90 = sshll.u32 [#allocation13], 4
      %s91 = int_to_ptr.vmem [resolvable:$true] %s90
      %96 = dma.hbm_to_vmem [thread:$0]  %s6, 1024, %s91, [#allocation12], 128, 128, 8
    $region29: #{tpu_custom_call.1} parent=1 // pred_fallthru
      _
    // Predicated region
    $region30: #{tpu_custom_call.1} parent=1 // pred_check
      _
    $region31: #{tpu_custom_call.1} parent=1 // pred_check_branch
      %98 = sbr.rel (0) target = $region33
    $region32: #{tpu_custom_call.1} parent=1 // pred_region
      %s100 = ssub.s32 16, 16
      %101 = vsyncadd [#allocation15], %s100
      %s103 = sshll.u32 [#allocation14], 4
      %s104 = int_to_ptr.vmem [resolvable:$true] %s103
      %106 = dma.hbm_to_vmem [thread:$0]  %s7, 16, %s104, [#allocation15]
    $region33: #{tpu_custom_call.1} parent=1 // pred_fallthru
      _
    // Predicated region
    $region34: #{tpu_custom_call.1} parent=1 // pred_check
      _
    $region35: #{tpu_custom_call.1} parent=1 // pred_check_branch
      %108 = sbr.rel (0) target = $region37
    $region36: #{tpu_custom_call.1} parent=1 // pred_region
      %109 = dma.done [#allocation3], 128
    $region37: #{tpu_custom_call.1} parent=1 // pred_fallthru
      _
    // Predicated region
    $region38: #{tpu_custom_call.1} parent=1 // pred_check
      _
    $region39: #{tpu_custom_call.1} parent=1 // pred_check_branch
      %111 = sbr.rel (0) target = $region41
    $region40: #{tpu_custom_call.1} parent=1 // pred_region
      %112 = dma.done [#allocation6], 256
    $region41: #{tpu_custom_call.1} parent=1 // pred_fallthru
      _
    // Predicated region
    $region42: #{tpu_custom_call.1} parent=1 // pred_check
      _
    $region43: #{tpu_custom_call.1} parent=1 // pred_check_branch
      %114 = sbr.rel (0) target = $region45
    $region44: #{tpu_custom_call.1} parent=1 // pred_region
      %115 = dma.done [#allocation6], 64
    $region45: #{tpu_custom_call.1} parent=1 // pred_fallthru
      _
    // Predicated region
    $region46: #{tpu_custom_call.1} parent=1 // pred_check
      _
    $region47: #{tpu_custom_call.1} parent=1 // pred_check_branch
      %117 = sbr.rel (0) target = $region49
    $region48: #{tpu_custom_call.1} parent=1 // pred_region
      %118 = dma.done [#allocation9], 16
    $region49: #{tpu_custom_call.1} parent=1 // pred_fallthru
      _
    // Predicated region
    $region50: #{tpu_custom_call.1} parent=1 // pred_check
      _
    $region51: #{tpu_custom_call.1} parent=1 // pred_check_branch
      %120 = sbr.rel (0) target = $region53
    $region52: #{tpu_custom_call.1} parent=1 // pred_region
      %121 = dma.done [#allocation9], 512
    $region53: #{tpu_custom_call.1} parent=1 // pred_fallthru
      _
    // Predicated region
    $region54: #{tpu_custom_call.1} parent=1 // pred_check
      _
    $region55: #{tpu_custom_call.1} parent=1 // pred_check_branch
      %123 = sbr.rel (0) target = $region57
    $region56: #{tpu_custom_call.1} parent=1 // pred_region
      %124 = dma.done [#allocation12], 16
    $region57: #{tpu_custom_call.1} parent=1 // pred_fallthru
      _
    // Predicated region
    $region58: #{tpu_custom_call.1} parent=1 // pred_check
      _
    $region59: #{tpu_custom_call.1} parent=1 // pred_check_branch
      %126 = sbr.rel (0) target = $region61
    $region60: #{tpu_custom_call.1} parent=1 // pred_region
      %127 = dma.done [#allocation12], 1024
    $region61: #{tpu_custom_call.1} parent=1 // pred_fallthru
      _
    // Predicated region
    $region62: #{tpu_custom_call.1} parent=1 // pred_check
      _
    $region63: #{tpu_custom_call.1} parent=1 // pred_check_branch
      %129 = sbr.rel (0) target = $region65
    $region64: #{tpu_custom_call.1} parent=1 // pred_region
      %130 = dma.done [#allocation15], 16
    $region65: #{tpu_custom_call.1} parent=1 // pred_fallthru
      _
    %v131 = vld [vmem:[#allocation5] sm:$0xff]
    %v132 = vld [vmem:[#allocation5 + $0x8] sm:$0xff]
    %v133 = vld [vmem:[#allocation7] sm:$0xf]
    %vm134 = vcmask 31744
    %v136 = vsel %vm134, %v131, 0
    %v139 = vsel %vm134, %v132, 0
    %vm141 = vcmask 1043456
    %v143 = vsel %vm141, %v133, 0
    %145 = vmatprep.subr.mxu0 0.0
    %146 = vmatpush1.msra.mxu0 %v143
    %147 = vmatprep.subr.mxu0 0.0
    %148 = vmatpush1.msra.mxu0 0.0
    %149 = vmatprep.subr.mxu0 0.0
    %150 = vmatpush1.msra.mxu0 0.0
    %151 = vmatprep.subr.mxu0 0.0
    %152 = vmatpush1.msra.mxu0 0.0
    %153 = vmatprep.subr.mxu0 0.0
    %154 = vmatpush1.msra.mxu0 0.0
    %155 = vmatprep.subr.mxu0 0.0
    %156 = vmatpush1.msra.mxu0 0.0
    %157 = vmatprep.subr.mxu0 0.0
    %158 = vmatpush1.msra.mxu0 0.0
    %159 = vmatprep.subr.mxu0 0.0
    %160 = vmatpush1.msra.mxu0 0.0
    %161 = vmatprep.subr.mxu0 0.0
    %162 = vmatpush1.msra.mxu0 0.0
    %163 = vmatprep.subr.mxu0 0.0
    %164 = vmatpush1.msra.mxu0 0.0
    %165 = vmatprep.subr.mxu0 0.0
    %166 = vmatpush1.msra.mxu0 0.0
    %167 = vmatprep.subr.mxu0 0.0
    %168 = vmatpush1.msra.mxu0 0.0
    %169 = vmatprep.subr.mxu0 0.0
    %170 = vmatpush1.msra.mxu0 0.0
    %171 = vmatprep.subr.mxu0 0.0
    %172 = vmatpush1.msra.mxu0 0.0
    %173 = vmatprep.subr.mxu0 0.0
    %174 = vmatpush1.msra.mxu0 0.0
    %175 = vmatprep.subr.mxu0 0.0
    %176 = vmatpush1.msra.mxu0 0.0
    %177 = vmatprep.subr.mxu0 0.0
    %178 = vmatpush1.msra.mxu0 0.0
    %179 = vmatprep.subr.mxu0 0.0
    %180 = vmatpush1.msra.mxu0 0.0
    %181 = vmatprep.subr.mxu0 0.0
    %182 = vmatpush1.msra.mxu0 0.0
    %183 = vmatprep.subr.mxu0 0.0
    %184 = vmatpush1.msra.mxu0 0.0
    %185 = vmatprep.subr.mxu0 0.0
    %186 = vmatpush1.msra.mxu0 0.0
    %187 = vmatprep.subr.mxu0 0.0
    %188 = vmatpush1.msra.mxu0 0.0
    %189 = vmatprep.subr.mxu0 0.0
    %190 = vmatpush1.msra.mxu0 0.0
    %191 = vmatprep.subr.mxu0 0.0
    %192 = vmatpush1.msra.mxu0 0.0
    %193 = vmatprep.subr.mxu0 0.0
    %194 = vmatpush1.msra.mxu0 0.0
    %195 = vmatprep.subr.mxu0 0.0
    %196 = vmatpush1.msra.mxu0 0.0
    %197 = vmatprep.subr.mxu0 0.0
    %198 = vmatpush1.msra.mxu0 0.0
    %199 = vmatprep.subr.mxu0 0.0
    %200 = vmatpush1.msra.mxu0 0.0
    %201 = vmatprep.subr.mxu0 0.0
    %202 = vmatpush1.msra.mxu0 0.0
    %203 = vmatprep.subr.mxu0 0.0
    %204 = vmatpush1.msra.mxu0 0.0
    %205 = vmatprep.subr.mxu0 0.0
    %206 = vmatpush1.msra.mxu0 0.0
    %207 = vmatprep.subr.mxu0 0.0
    %208 = vmatpush1.msra.mxu0 0.0
    %209 = vmatprep.mubr.f32.mxu0 0.0
    %210 = vmatmul.mubr.f32.gmra.mrb[0].mxu0 %v136
    %v211 = vpop.f32.mrb[0].mxu0
    %v212 = vadd.f32 0.0, %v211
    %v213 = vpop.f32.mrb[0].mxu0
    %214 = vmatprep.mubr.f32.mxu0 0.0
    %215 = vmatmul.mubr.f32.gmra.mrb[0].mxu0 %v139
    %v216 = vpop.f32.mrb[0].mxu0
    %v217 = vadd.f32 0.0, %v216
    %v218 = vpop.f32.mrb[0].mxu0
    %219 = vdwg.mxu0
    %v220 = vld [vmem:[#allocation2] sm:$0xf]
    %v221 = vld [vmem:[#allocation2 + $0x4] sm:$0xf]
    %v222 = vunpack.c.l.bf16 %v220
    %v223 = vunpack.c.l.bf16 %v221
    %v224 = vld [vmem:[#allocation8] sm:$0x1]
    %v226 = vlaneseq
    %v227 = vshrl.u32 %v226, 7
    %v228 = vsub.s32 0, %v227
    %v229 = vrot.slane %v224, %v228
    %vm231 = vcmask 130048
    %v233 = vsel %vm231, %v222, 0
    %v236 = vsel %vm231, %v223, 0
    %238 = vmatprep.subr.mxu0 0.0
    %239 = vmatpush1.msra.mxu0 %v212
    %240 = vmatprep.subr.mxu0 0.0
    %241 = vmatpush1.msra.mxu0 %v217
    %242 = vmatprep.subr.mxu0 0.0
    %243 = vmatpush1.msra.mxu0 0.0
    %244 = vmatprep.subr.mxu0 0.0
    %245 = vmatpush1.msra.mxu0 0.0
    %246 = vmatprep.subr.mxu0 0.0
    %247 = vmatpush1.msra.mxu0 0.0
    %248 = vmatprep.subr.mxu0 0.0
    %249 = vmatpush1.msra.mxu0 0.0
    %250 = vmatprep.subr.mxu0 0.0
    %251 = vmatpush1.msra.mxu0 0.0
    %252 = vmatprep.subr.mxu0 0.0
    %253 = vmatpush1.msra.mxu0 0.0
    %254 = vmatprep.subr.mxu0 0.0
    %255 = vmatpush1.msra.mxu0 0.0
    %256 = vmatprep.subr.mxu0 0.0
    %257 = vmatpush1.msra.mxu0 0.0
    %258 = vmatprep.subr.mxu0 0.0
    %259 = vmatpush1.msra.mxu0 0.0
    %260 = vmatprep.subr.mxu0 0.0
    %261 = vmatpush1.msra.mxu0 0.0
    %262 = vmatprep.subr.mxu0 0.0
    %263 = vmatpush1.msra.mxu0 0.0
    %264 = vmatprep.subr.mxu0 0.0
    %265 = vmatpush1.msra.mxu0 0.0
    %266 = vmatprep.subr.mxu0 0.0
    %267 = vmatpush1.msra.mxu0 0.0
    %268 = vmatprep.subr.mxu0 0.0
    %269 = vmatpush1.msra.mxu0 0.0
    %270 = vmatprep.subr.mxu0 0.0
    %271 = vmatpush1.msra.mxu0 0.0
    %272 = vmatprep.subr.mxu0 0.0
    %273 = vmatpush1.msra.mxu0 0.0
    %274 = vmatprep.subr.mxu0 0.0
    %275 = vmatpush1.msra.mxu0 0.0
    %276 = vmatprep.subr.mxu0 0.0
    %277 = vmatpush1.msra.mxu0 0.0
    %278 = vmatprep.subr.mxu0 0.0
    %279 = vmatpush1.msra.mxu0 0.0
    %280 = vmatprep.subr.mxu0 0.0
    %281 = vmatpush1.msra.mxu0 0.0
    %282 = vmatprep.subr.mxu0 0.0
    %283 = vmatpush1.msra.mxu0 0.0
    %284 = vmatprep.subr.mxu0 0.0
    %285 = vmatpush1.msra.mxu0 0.0
    %286 = vmatprep.subr.mxu0 0.0
    %287 = vmatpush1.msra.mxu0 0.0
    %288 = vmatprep.subr.mxu0 0.0
    %289 = vmatpush1.msra.mxu0 0.0
    %290 = vmatprep.subr.mxu0 0.0
    %291 = vmatpush1.msra.mxu0 0.0
    %292 = vmatprep.subr.mxu0 0.0
    %293 = vmatpush1.msra.mxu0 0.0
    %294 = vmatprep.subr.mxu0 0.0
    %295 = vmatpush1.msra.mxu0 0.0
    %296 = vmatprep.subr.mxu0 0.0
    %297 = vmatpush1.msra.mxu0 0.0
    %298 = vmatprep.subr.mxu0 0.0
    %299 = vmatpush1.msra.mxu0 0.0
    %300 = vmatprep.subr.mxu0 0.0
    %301 = vmatpush1.msra.mxu0 0.0
    %302 = vmatprep.mubr.f32.mxu0 0.0
    %303 = vmatmul.mubr.f32.gmra.mrb[0].mxu0 %v233
    %v304 = vpop.f32.mrb[0].mxu0
    %v305 = vadd.f32 %v229, %v304
    %v306 = vpop.f32.mrb[0].mxu0
    %307 = vmatprep.mubr.f32.mxu0 0.0
    %308 = vmatmul.mubr.f32.gmra.mrb[0].mxu0 %v236
    %v309 = vpop.f32.mrb[0].mxu0
    %v310 = vadd.f32 %v229, %v309
    %v311 = vpop.f32.mrb[0].mxu0
    %312 = vdwg.mxu0
    %v313 = vxor.u32 %v305, 2147483648
    %v314 = vxor.u32 %v310, 2147483648
    %v315 = vmul.f32 %v313, 1.442695
    %v316 = vpow.pop %v315
    %v317 = vmul.f32 %v314, 1.442695
    %v318 = vpow.pop %v317
    %v319 = vadd.f32 %v316, 1.0
    %v320 = vadd.f32 %v318, 1.0
    %v321 = vrcp.pop %v319
    %v322 = vmul.f32 1.0, %v321
    %v323 = vrcp.pop %v320
    %v324 = vmul.f32 1.0, %v323
    %v325 = vld [vmem:[#allocation10] sm:$0xff]
    %v326 = vld [vmem:[#allocation10 + $0x8] sm:$0xff]
    %v327 = vld [vmem:[#allocation10 + $0x10] sm:$0xff]
    %v328 = vld [vmem:[#allocation10 + $0x18] sm:$0xff]
    %v329 = vld [vmem:[#allocation11] sm:$0x1]
    %v331 = vlaneseq
    %v332 = vshrl.u32 %v331, 7
    %v333 = vsub.s32 0, %v332
    %v334 = vrot.slane %v329, %v333
    %vm336 = vcmask 261120
    %v338 = vsel %vm336, %v322, 0
    %v341 = vsel %vm336, %v324, 0
    %343 = vmatprep.subr.mxu0 0.0
    %344 = vmatpush1.msra.mxu0 %v325
    %345 = vmatprep.subr.mxu0 0.0
    %346 = vmatpush1.msra.mxu0 %v326
    %347 = vmatprep.subr.mxu0 0.0
    %348 = vmatpush1.msra.mxu0 %v327
    %349 = vmatprep.subr.mxu0 0.0
    %350 = vmatpush1.msra.mxu0 %v328
    %351 = vmatprep.subr.mxu0 0.0
    %352 = vmatpush1.msra.mxu0 0.0
    %353 = vmatprep.subr.mxu0 0.0
    %354 = vmatpush1.msra.mxu0 0.0
    %355 = vmatprep.subr.mxu0 0.0
    %356 = vmatpush1.msra.mxu0 0.0
    %357 = vmatprep.subr.mxu0 0.0
    %358 = vmatpush1.msra.mxu0 0.0
    %359 = vmatprep.subr.mxu0 0.0
    %360 = vmatpush1.msra.mxu0 0.0
    %361 = vmatprep.subr.mxu0 0.0
    %362 = vmatpush1.msra.mxu0 0.0
    %363 = vmatprep.subr.mxu0 0.0
    %364 = vmatpush1.msra.mxu0 0.0
    %365 = vmatprep.subr.mxu0 0.0
    %366 = vmatpush1.msra.mxu0 0.0
    %367 = vmatprep.subr.mxu0 0.0
    %368 = vmatpush1.msra.mxu0 0.0
    %369 = vmatprep.subr.mxu0 0.0
    %370 = vmatpush1.msra.mxu0 0.0
    %371 = vmatprep.subr.mxu0 0.0
    %372 = vmatpush1.msra.mxu0 0.0
    %373 = vmatprep.subr.mxu0 0.0
    %374 = vmatpush1.msra.mxu0 0.0
    %375 = vmatprep.subr.mxu0 0.0
    %376 = vmatpush1.msra.mxu0 0.0
    %377 = vmatprep.subr.mxu0 0.0
    %378 = vmatpush1.msra.mxu0 0.0
    %379 = vmatprep.subr.mxu0 0.0
    %380 = vmatpush1.msra.mxu0 0.0
    %381 = vmatprep.subr.mxu0 0.0
    %382 = vmatpush1.msra.mxu0 0.0
    %383 = vmatprep.subr.mxu0 0.0
    %384 = vmatpush1.msra.mxu0 0.0
    %385 = vmatprep.subr.mxu0 0.0
    %386 = vmatpush1.msra.mxu0 0.0
    %387 = vmatprep.subr.mxu0 0.0
    %388 = vmatpush1.msra.mxu0 0.0
    %389 = vmatprep.subr.mxu0 0.0
    %390 = vmatpush1.msra.mxu0 0.0
    %391 = vmatprep.subr.mxu0 0.0
    %392 = vmatpush1.msra.mxu0 0.0
    %393 = vmatprep.subr.mxu0 0.0
    %394 = vmatpush1.msra.mxu0 0.0
    %395 = vmatprep.subr.mxu0 0.0
    %396 = vmatpush1.msra.mxu0 0.0
    %397 = vmatprep.subr.mxu0 0.0
    %398 = vmatpush1.msra.mxu0 0.0
    %399 = vmatprep.subr.mxu0 0.0
    %400 = vmatpush1.msra.mxu0 0.0
    %401 = vmatprep.subr.mxu0 0.0
    %402 = vmatpush1.msra.mxu0 0.0
    %403 = vmatprep.subr.mxu0 0.0
    %404 = vmatpush1.msra.mxu0 0.0
    %405 = vmatprep.subr.mxu0 0.0
    %406 = vmatpush1.msra.mxu0 0.0
    %407 = vmatprep.mubr.f32.mxu0 0.0
    %408 = vmatmul.mubr.f32.gmra.mrb[0].mxu0 %v338
    %v409 = vpop.f32.mrb[0].mxu0
    %v410 = vadd.f32 %v334, %v409
    %v411 = vpop.f32.mrb[0].mxu0
    %412 = vmatprep.mubr.f32.mxu0 0.0
    %413 = vmatmul.mubr.f32.gmra.mrb[0].mxu0 %v341
    %v414 = vpop.f32.mrb[0].mxu0
    %v415 = vadd.f32 %v334, %v414
    %v416 = vpop.f32.mrb[0].mxu0
    %417 = vdwg.mxu0
    %v418 = vxor.u32 %v410, 2147483648
    %v419 = vxor.u32 %v415, 2147483648
    %v420 = vmul.f32 %v418, 1.442695
    %v421 = vpow.pop %v420
    %v422 = vmul.f32 %v419, 1.442695
    %v423 = vpow.pop %v422
    %v424 = vadd.f32 %v421, 1.0
    %v425 = vadd.f32 %v423, 1.0
    %v426 = vrcp.pop %v424
    %v427 = vmul.f32 1.0, %v426
    %v428 = vrcp.pop %v425
    %v429 = vmul.f32 1.0, %v428
    %v430 = vld [vmem:[#allocation13] sm:$0xff]
    %v431 = vld [vmem:[#allocation13 + $0x8] sm:$0xff]
    %v432 = vld [vmem:[#allocation13 + $0x10] sm:$0xff]
    %v433 = vld [vmem:[#allocation13 + $0x18] sm:$0xff]
    %v434 = vld [vmem:[#allocation13 + $0x20] sm:$0xff]
    %v435 = vld [vmem:[#allocation13 + $0x28] sm:$0xff]
    %v436 = vld [vmem:[#allocation13 + $0x30] sm:$0xff]
    %v437 = vld [vmem:[#allocation13 + $0x38] sm:$0xff]
    %v438 = vld [vmem:[#allocation14] sm:$0x1]
    %v440 = vlaneseq
    %v441 = vshrl.u32 %v440, 7
    %v442 = vsub.s32 0, %v441
    %v443 = vrot.slane %v438, %v442
    %vm445 = vcmask 523264
    %v447 = vsel %vm445, %v427, 0
    %v450 = vsel %vm445, %v429, 0
    %452 = vmatprep.subr.mxu0 0.0
    %453 = vmatpush1.msra.mxu0 %v430
    %454 = vmatprep.subr.mxu0 0.0
    %455 = vmatpush1.msra.mxu0 %v431
    %456 = vmatprep.subr.mxu0 0.0
    %457 = vmatpush1.msra.mxu0 %v432
    %458 = vmatprep.subr.mxu0 0.0
    %459 = vmatpush1.msra.mxu0 %v433
    %460 = vmatprep.subr.mxu0 0.0
    %461 = vmatpush1.msra.mxu0 %v434
    %462 = vmatprep.subr.mxu0 0.0
    %463 = vmatpush1.msra.mxu0 %v435
    %464 = vmatprep.subr.mxu0 0.0
    %465 = vmatpush1.msra.mxu0 %v436
    %466 = vmatprep.subr.mxu0 0.0
    %467 = vmatpush1.msra.mxu0 %v437
    %468 = vmatprep.subr.mxu0 0.0
    %469 = vmatpush1.msra.mxu0 0.0
    %470 = vmatprep.subr.mxu0 0.0
    %471 = vmatpush1.msra.mxu0 0.0
    %472 = vmatprep.subr.mxu0 0.0
    %473 = vmatpush1.msra.mxu0 0.0
    %474 = vmatprep.subr.mxu0 0.0
    %475 = vmatpush1.msra.mxu0 0.0
    %476 = vmatprep.subr.mxu0 0.0
    %477 = vmatpush1.msra.mxu0 0.0
    %478 = vmatprep.subr.mxu0 0.0
    %479 = vmatpush1.msra.mxu0 0.0
    %480 = vmatprep.subr.mxu0 0.0
    %481 = vmatpush1.msra.mxu0 0.0
    %482 = vmatprep.subr.mxu0 0.0
    %483 = vmatpush1.msra.mxu0 0.0
    %484 = vmatprep.subr.mxu0 0.0
    %485 = vmatpush1.msra.mxu0 0.0
    %486 = vmatprep.subr.mxu0 0.0
    %487 = vmatpush1.msra.mxu0 0.0
    %488 = vmatprep.subr.mxu0 0.0
    %489 = vmatpush1.msra.mxu0 0.0
    %490 = vmatprep.subr.mxu0 0.0
    %491 = vmatpush1.msra.mxu0 0.0
    %492 = vmatprep.subr.mxu0 0.0
    %493 = vmatpush1.msra.mxu0 0.0
    %494 = vmatprep.subr.mxu0 0.0
    %495 = vmatpush1.msra.mxu0 0.0
    %496 = vmatprep.subr.mxu0 0.0
    %497 = vmatpush1.msra.mxu0 0.0
    %498 = vmatprep.subr.mxu0 0.0
    %499 = vmatpush1.msra.mxu0 0.0
    %500 = vmatprep.subr.mxu0 0.0
    %501 = vmatpush1.msra.mxu0 0.0
    %502 = vmatprep.subr.mxu0 0.0
    %503 = vmatpush1.msra.mxu0 0.0
    %504 = vmatprep.subr.mxu0 0.0
    %505 = vmatpush1.msra.mxu0 0.0
    %506 = vmatprep.subr.mxu0 0.0
    %507 = vmatpush1.msra.mxu0 0.0
    %508 = vmatprep.subr.mxu0 0.0
    %509 = vmatpush1.msra.mxu0 0.0
    %510 = vmatprep.subr.mxu0 0.0
    %511 = vmatpush1.msra.mxu0 0.0
    %512 = vmatprep.subr.mxu0 0.0
    %513 = vmatpush1.msra.mxu0 0.0
    %514 = vmatprep.subr.mxu0 0.0
    %515 = vmatpush1.msra.mxu0 0.0
    %516 = vmatprep.mubr.f32.mxu0 0.0
    %517 = vmatmul.mubr.f32.gmra.mrb[0].mxu0 %v447
    %v518 = vpop.f32.mrb[0].mxu0
    %v519 = vadd.f32 %v443, %v518
    %v520 = vpop.f32.mrb[0].mxu0
    %521 = vmatprep.mubr.f32.mxu0 0.0
    %522 = vmatmul.mubr.f32.gmra.mrb[0].mxu0 %v450
    %v523 = vpop.f32.mrb[0].mxu0
    %v524 = vadd.f32 %v443, %v523
    %v525 = vpop.f32.mrb[0].mxu0
    %526 = vdwg.mxu0
    %vm527 = vcmp.ge.f32.partialorder %v519, 0.0
    %vm528 = vcmp.ge.f32.partialorder %v524, 0.0
    %v529 = vmul.f32 %v519, 0.01
    %v530 = vmul.f32 %v524, 0.01
    %v531 = vsel %vm527, %v519, %v529
    %v532 = vsel %vm528, %v524, %v530
    %533 = vst [vmem:[#allocation16] sm:$0xff] %v531
    %534 = vst [vmem:[#allocation16 + $0x8] sm:$0xff] %v532
    // Predicated region
    $region66: #{tpu_custom_call.1} parent=1 // pred_check
      _
    $region67: #{tpu_custom_call.1} parent=1 // pred_check_branch
      %536 = sbr.rel (0) target = $region69
    $region68: #{tpu_custom_call.1} parent=1 // pred_region
      %s538 = ssub.s32 256, 256
      %539 = vsyncadd [#allocation4], %s538
      %s540 = sshll.u32 [#allocation16], 4
      %s541 = int_to_ptr.vmem [resolvable:$true] %s540
      %546 = dma.vmem_to_hbm [thread:$0]  %s541, 256, %s8, [#allocation4], 128, 128, 8
    $region69: #{tpu_custom_call.1} parent=1 // pred_fallthru
      _
    // Predicated region
    $region70: #{tpu_custom_call.1} parent=1 // pred_check
      _
    $region71: #{tpu_custom_call.1} parent=1 // pred_check_branch
      %548 = sbr.rel (0) target = $region73
    $region72: #{tpu_custom_call.1} parent=1 // pred_region
      %549 = dma.done [#allocation4], 256
    $region73: #{tpu_custom_call.1} parent=1 // pred_fallthru
      _
    %550 = vsyncpa [#allocation3], 1
    %551 = vsyncpa [#allocation6], 1
    %552 = vsyncpa [#allocation9], 1
    %553 = vsyncpa [#allocation12], 1
    %554 = vsyncpa [#allocation15], 1
    %555 = vsyncpa [#allocation4], 1

</llo_original>
